<compile_context>
chip_gen: v5e
topology: v5e:2x2
jax: 0.10.0
libtpu: 0.0.40
codegen_flags: <defaults>
</compile_context>

<pallas_src>
import functools
import math

import jax
import jax.numpy as jnp
from jax.experimental import pallas as pl
from jax.experimental.pallas import tpu as pltpu

_LANES = 128


# --------------------------------------------------------------------------- #
# Hardware-aware sizing helpers
# --------------------------------------------------------------------------- #
def _vmem_capacity_bytes() -> int:
    """Physical VMEM per TensorCore; conservative (v7x) fallback on failure."""
    try:
        info = pltpu.get_tpu_info()
        for attr in ("vmem_capacity_bytes", "vmem_bytes", "vmem_size_bytes"):
            val = getattr(info, attr, None)
            if val:
                return int(val)
    except Exception:
        pass
    return 64 * 1024 * 1024  # v7x per-core VMEM (smallest of v5e/v6e/v7x)


def _sublane_multiple(itemsize: int) -> int:
    # Sub-32-bit dtypes pack 2/4 rows per sublane: keep row tiles at a multiple
    # of 16 (bf16) / 32 (int8) so the fp32 upcast doesn't force repacking.
    return 8 * (4 // max(1, itemsize))


def _pick_tile_rows(rows: int, row_width: int, itemsize: int, sub: int) -> int:
    """Largest row tile that fits the VMEM budget AND keeps >= ~8 grid steps."""
    if rows <= sub:
        return rows  # full extent is always a legal block shape
    vmem = _vmem_capacity_bytes()
    # Per live row: 2x input + 2x output buffers (native dtype, double-buffered
    # by the pipeline) plus ~6 full-tile fp32 temporaries inside the kernel
    # (upcast x, x*x, mean, var, y, hi/lo casts) -- review item: don't
    # under-count and risk spills on v7x's 64 MiB VMEM.
    bytes_per_row = row_width * (4 * itemsize + 6 * 4)
    # v5e/v6e (128 MiB VMEM): allow up to vmem//4 (=32 MiB); v7x (64 MiB): 16 MiB.
    if vmem > 96 * 1024 * 1024:
        budget = vmem // 4
    else:
        budget = min(vmem // 4, 16 * 1024 * 1024)
    cap = max(sub, budget // max(bytes_per_row, 1))
    tile = min(cap, 8192, rows)
    # Keep at least ~8 grid steps when rows allow: preserves DMA/compute
    # overlap and lets v7x's two TensorCores shard the "parallel" axis.
    min_steps = 8
    if rows > min_steps * sub:
        per_step = -(-rows // min_steps)                      # cdiv(rows, 8)
        per_step = ((per_step + sub - 1) // sub) * sub        # round up to sub
        tile = min(tile, per_step)
    tile = max(sub, (tile // sub) * sub)
    return tile


def _vmem_limit_bytes(tile_rows: int, row_width: int, itemsize: int) -> int:
    block = tile_rows * row_width
    # Double-buffered in/out (native dtype) + ~6 fp32 full-tile temporaries.
    need = block * (4 * itemsize + 6 * 4)
    need += 4 * row_width * 4            # resident fp32 weight/bias buffers
    need += 2 * _LANES * _LANES * 2      # packed-path bf16 seg matrix buffers
    limit = max(32 * 1024 * 1024, 2 * need)   # never below scoped default
    cap = _vmem_capacity_bytes()
    return int(min(limit, max(cap - 8 * 1024 * 1024, 16 * 1024 * 1024)))


# --------------------------------------------------------------------------- #
# Kernels
# --------------------------------------------------------------------------- #
def _ln_kernel(x_ref, w_ref, b_ref, o_ref, *, eps: float):
    # x_ref: (tile_rows, D) block; normalize each row over the last (lane) axis.
    x = x_ref[...].astype(jnp.float32)
    inv_d = 1.0 / x.shape[-1]
    mean = jnp.sum(x, axis=-1, keepdims=True) * inv_d
    xc = x - mean
    var = jnp.sum(xc * xc, axis=-1, keepdims=True) * inv_d   # biased (unbiased=False)
    y = xc * jax.lax.rsqrt(var + eps)
    # weight/bias are fp32 (1, D), resident across the grid -> no per-step casts.
    y = y * w_ref[...] + b_ref[...]
    o_ref[...] = y.astype(o_ref.dtype)


def _seg_reduce(v, seg_bf16):
    # fp32-grade segmented mean of fp32 `v` (tr, 128) against the bf16
    # block-diagonal 1/D matrix, using two DEFAULT-precision bf16 MXU passes
    # (hi/lo split) with fp32 accumulation.  Relative error ~2^-18 -- fp32-grade
    # -- at 1/3 the MXU passes of Precision.HIGHEST.
    hi = v.astype(jnp.bfloat16)
    lo = (v - hi.astype(jnp.float32)).astype(jnp.bfloat16)
    out = jnp.dot(hi, seg_bf16, preferred_element_type=jnp.float32)
    out = out + jnp.dot(lo, seg_bf16, preferred_element_type=jnp.float32)
    return out


def _ln_packed_kernel(x_ref, w_ref, b_ref, seg_ref, o_ref, *, eps: float):
    # x_ref: (tile_rows, k*D) -- each 128-lane physical row packs k logical rows
    # of width D.  seg_ref is a (k*D, k*D) bf16 block-diagonal matrix with 1/D
    # in each DxD diagonal block, so `x @ seg` yields every segment's mean
    # already broadcast over its own segment.  Loads/stores/reductions stay
    # 128-lane dense; the (otherwise idle) MXU performs the segmented reduce.
    x = x_ref[...].astype(jnp.float32)
    seg = seg_ref[...]
    # E[x] and E[x^2] are independent -> their MXU pushes issue back-to-back
    # (no serial dependence through `mean`).
    mean = _seg_reduce(x, seg)
    ex2 = _seg_reduce(x * x, seg)
    # var = E[x^2] - mean^2, clamped: cancellation can go slightly negative.
    var = jnp.maximum(ex2 - mean * mean, 0.0)
    y = (x - mean) * jax.lax.rsqrt(var + eps)
    y = y * w_ref[...] + b_ref[...]
    o_ref[...] = y.astype(o_ref.dtype)


# --------------------------------------------------------------------------- #
# pallas_call wrappers
# --------------------------------------------------------------------------- #
def _ln_call(x2, w32, b32, eps, itemsize, sub, tile_rows=None):
    rows, d = x2.shape
    tr = tile_rows if tile_rows is not None else _pick_tile_rows(rows, d, itemsize, sub)
    grid = (pl.cdiv(rows, tr),)
    return pl.pallas_call(
        functools.partial(_ln_kernel, eps=float(eps)),
        out_shape=jax.ShapeDtypeStruct((rows, d), x2.dtype),
        grid_spec=pltpu.PrefetchScalarGridSpec(
            num_scalar_prefetch=0,
            grid=grid,
            in_specs=[
                pl.BlockSpec((tr, d), lambda i: (i, 0)),
                pl.BlockSpec((1, d), lambda i: (0, 0)),
                pl.BlockSpec((1, d), lambda i: (0, 0)),
            ],
            out_specs=pl.BlockSpec((tr, d), lambda i: (i, 0)),
        ),
        compiler_params=pltpu.CompilerParams(
            dimension_semantics=("parallel",),
            vmem_limit_bytes=_vmem_limit_bytes(tr, d, itemsize),
        ),
    )(x2, w32, b32)


def _ln_packed_call(xk, wk, bk, seg, eps, itemsize, sub, tile_rows=None):
    rows2, dp = xk.shape
    tr = tile_rows if tile_rows is not None else _pick_tile_rows(rows2, dp, itemsize, sub)
    grid = (pl.cdiv(rows2, tr),)
    return pl.pallas_call(
        functools.partial(_ln_packed_kernel, eps=float(eps)),
        out_shape=jax.ShapeDtypeStruct((rows2, dp), xk.dtype),
        grid_spec=pltpu.PrefetchScalarGridSpec(
            num_scalar_prefetch=0,
            grid=grid,
            in_specs=[
                pl.BlockSpec((tr, dp), lambda i: (i, 0)),
                pl.BlockSpec((1, dp), lambda i: (0, 0)),
                pl.BlockSpec((1, dp), lambda i: (0, 0)),
                pl.BlockSpec((dp, dp), lambda i: (0, 0)),
            ],
            out_specs=pl.BlockSpec((tr, dp), lambda i: (i, 0)),
        ),
        compiler_params=pltpu.CompilerParams(
            dimension_semantics=("parallel",),
            vmem_limit_bytes=_vmem_limit_bytes(tr, dp, itemsize),
        ),
    )(xk, wk, bk, seg)


# --------------------------------------------------------------------------- #
# Public wrapper
# --------------------------------------------------------------------------- #
def layer_norm_pallas(x, weight, bias, normalized_shape, eps=1e-5, tile_rows=None):
    """LayerNorm over the trailing `normalized_shape` dims of x (PyTorch semantics)."""
    if isinstance(normalized_shape, int):
        normalized_shape = (normalized_shape,)
    n_norm = len(normalized_shape)
    assert tuple(x.shape[-n_norm:]) == tuple(normalized_shape)

    lead_shape = x.shape[:-n_norm]
    rows = int(math.prod(lead_shape)) if lead_shape else 1
    d = int(math.prod(normalized_shape))
    itemsize = jnp.dtype(x.dtype).itemsize
    sub = _sublane_multiple(itemsize)

    # Affine params stay fp32 for the whole kernel (PyTorch keeps params fp32
    # even for low-precision activations); cast once here, never per grid step.
    if weight is None:
        w32 = jnp.ones((1, d), dtype=jnp.float32)
        b32 = jnp.zeros((1, d), dtype=jnp.float32)
    else:
        w32 = jnp.asarray(weight).reshape(1, d).astype(jnp.float32)
        b32 = jnp.asarray(bias).reshape(1, d).astype(jnp.float32)

    x2 = x.reshape(rows, d)

    packed = (d < _LANES) and (_LANES % d == 0)
    if packed:
        k = _LANES // d
        dp = k * d  # == 128
        rows_bulk = (rows // k) * k
        if rows_bulk == 0:
            packed = False
        else:
            wk = jnp.tile(w32, (1, k))
            bk = jnp.tile(b32, (1, k))
            seg_ids = jnp.arange(dp) // d
            seg = ((seg_ids[:, None] == seg_ids[None, :]).astype(jnp.float32)
                   * (1.0 / d)).astype(jnp.bfloat16)  # 1/D is a power of two -> exact

            tail = rows - rows_bulk
            if tail == 0:
                # Common case: metadata-only reshape, fully lane-dense.
                xk = x2.reshape(rows // k, dp)
                out = _ln_packed_call(xk, wk, bk, seg, eps, itemsize, sub, tile_rows)
                return out.reshape(x.shape)
            # Ragged row count (rare): process the k-aligned bulk with the
            # lane-dense kernel and the <k-row tail with the general kernel --
            # no full-tensor jnp.pad / output-slice HBM passes.
            xk = x2[:rows_bulk].reshape(rows_bulk // k, dp)
            out_bulk = _ln_packed_call(xk, wk, bk, seg, eps, itemsize, sub, tile_rows)
            out_bulk = out_bulk.reshape(rows_bulk, d)
            out_tail = _ln_call(x2[rows_bulk:], w32, b32, eps, itemsize, sub)
            out = jnp.concatenate([out_bulk, out_tail], axis=0)
            return out.reshape(x.shape)

    # ---- general path (D >= 128, D not a divisor of 128, or rows < k) -------
    out = _ln_call(x2, w32, b32, eps, itemsize, sub, tile_rows)
    return out.reshape(x.shape)


# --------------------------------------------------------------------------- #
# Pure-JAX reference (mirrors the PyTorch module)
# --------------------------------------------------------------------------- #
def layer_norm_reference(x, weight, bias, normalized_shape, eps=1e-5):
    if isinstance(normalized_shape, int):
        normalized_shape = (normalized_shape,)
    axes = tuple(range(x.ndim - len(normalized_shape), x.ndim))
    xf = x.astype(jnp.float32)
    mean = jnp.mean(xf, axis=axes, keepdims=True)
    var = jnp.mean((xf - mean) ** 2, axis=axes, keepdims=True)
    y = (xf - mean) / jnp.sqrt(var + eps)
    if weight is not None:
        y = y * weight.astype(jnp.float32) + bias.astype(jnp.float32)
    return y.astype(x.dtype)


if __name__ == "__main__":
    key = jax.random.PRNGKey(0)
    k_x, k_w, k_b, k_x2, k_x3 = jax.random.split(key, 5)

    # Module config from the spec: LayerNorm(32), eps=1e-5, elementwise_affine=True.
    hidden = 32
    eps = 1e-5
    x = jax.random.normal(k_x, (2, 8, hidden), dtype=jnp.float32)
    # Non-trivial affine params (deterministic) so the affine/broadcast path is
    # actually exercised (PyTorch's ones/zeros init would hide bugs there).
    weight = 1.0 + 0.1 * jax.random.normal(k_w, (hidden,), dtype=jnp.float32)
    bias = 0.1 * jax.random.normal(k_b, (hidden,), dtype=jnp.float32)

    # 1) Packed (lane-dense) path, rows divisible by k -> zero-copy reshape.
    out = layer_norm_pallas(x, weight, bias, (hidden,), eps=eps)
    out = jax.block_until_ready(out)
    ref = layer_norm_reference(x, weight, bias, (hidden,), eps=eps)
    assert out.shape == x.shape and out.dtype == x.dtype
    assert float(jnp.max(jnp.abs(out - ref))) < 2e-3, "packed-path mismatch"

    # 2) Packed path with a ragged row count (rows=15, k=4): bulk + tail split.
    x3 = jax.random.normal(k_x3, (3, 5, hidden), dtype=jnp.float32)
    out3 = jax.block_until_ready(layer_norm_pallas(x3, weight, bias, (hidden,), eps=eps))
    ref3 = layer_norm_reference(x3, weight, bias, (hidden,), eps=eps)
    assert out3.shape == x3.shape and out3.dtype == x3.dtype
    assert float(jnp.max(jnp.abs(out3 - ref3))) < 2e-3, "ragged packed-path mismatch"

    # 3) General (D >= 128) path at a small size, no affine.
    d2 = 256
    x2 = jax.random.normal(k_x2, (2, 8, d2), dtype=jnp.float32)
    out2 = jax.block_until_ready(layer_norm_pallas(x2, None, None, (d2,), eps=eps))
    ref2 = layer_norm_reference(x2, None, None, (d2,), eps=eps)
    assert float(jnp.max(jnp.abs(out2 - ref2))) < 1e-4, "general-path mismatch"

    print("KERNEL_OK")
</pallas_src>

<mosaic_0001>
module attributes {stable_mosaic.version = 11 : i64} {
  func.func @_ln_packed_kernel(%arg0: i32, %arg1: memref<4x128xf32, #tpu.memory_space<vmem>>, %arg2: memref<1x128xf32, #tpu.memory_space<vmem>>, %arg3: memref<1x128xf32, #tpu.memory_space<vmem>>, %arg4: memref<128x128xbf16, #tpu.memory_space<vmem>>, %arg5: memref<4x128xf32, #tpu.memory_space<vmem>>) attributes {dimension_semantics = [#tpu.dimension_semantics<parallel>], iteration_bounds = array<i64: 1>, scalar_prefetch = 0 : i64, scratch_operands = 0 : i64, tpu.core_type = #tpu.core_type<tc>, window_params = [{transform_indices = @transform_0, window_bounds = array<i64: 4, 128>}, {pipeline_mode = #tpu.pipeline_mode<synchronous>, transform_indices = @transform_1, window_bounds = array<i64: 1, 128>}, {pipeline_mode = #tpu.pipeline_mode<synchronous>, transform_indices = @transform_2, window_bounds = array<i64: 1, 128>}, {pipeline_mode = #tpu.pipeline_mode<synchronous>, transform_indices = @transform_3, window_bounds = array<i64: 128, 128>}, {transform_indices = @transform_4, window_bounds = array<i64: 4, 128>}]} {
    %c0 = arith.constant 0 : index
    %c0_0 = arith.constant 0 : index
    %0 = vector.load %arg1[%c0, %c0_0] : memref<4x128xf32, #tpu.memory_space<vmem>>, vector<4x128xf32>
    %c0_1 = arith.constant 0 : index
    %c0_2 = arith.constant 0 : index
    %1 = vector.load %arg4[%c0_1, %c0_2] : memref<128x128xbf16, #tpu.memory_space<vmem>>, vector<128x128xbf16>
    %2 = arith.truncf %0 : vector<4x128xf32> to vector<4x128xbf16>
    %3 = arith.extf %2 : vector<4x128xbf16> to vector<4x128xf32>
    %4 = arith.subf %0, %3 : vector<4x128xf32>
    %5 = arith.truncf %4 : vector<4x128xf32> to vector<4x128xbf16>
    %cst = arith.constant dense<0.000000e+00> : vector<4x128xf32>
    %6 = tpu.matmul %2, %1, %cst {dimension_numbers = #tpu.dot_dimension_numbers<[1], [0], [0], [1], [0, 0, 1, 1], [], []>} : vector<4x128xbf16>, vector<128x128xbf16>, vector<4x128xf32> -> vector<4x128xf32>
    %cst_3 = arith.constant dense<0.000000e+00> : vector<4x128xf32>
    %7 = tpu.matmul %5, %1, %cst_3 {dimension_numbers = #tpu.dot_dimension_numbers<[1], [0], [0], [1], [0, 0, 1, 1], [], []>} : vector<4x128xbf16>, vector<128x128xbf16>, vector<4x128xf32> -> vector<4x128xf32>
    %8 = arith.addf %6, %7 : vector<4x128xf32>
    %9 = arith.mulf %0, %0 : vector<4x128xf32>
    %10 = arith.truncf %9 : vector<4x128xf32> to vector<4x128xbf16>
    %11 = arith.extf %10 : vector<4x128xbf16> to vector<4x128xf32>
    %12 = arith.subf %9, %11 : vector<4x128xf32>
    %13 = arith.truncf %12 : vector<4x128xf32> to vector<4x128xbf16>
    %cst_4 = arith.constant dense<0.000000e+00> : vector<4x128xf32>
    %14 = tpu.matmul %10, %1, %cst_4 {dimension_numbers = #tpu.dot_dimension_numbers<[1], [0], [0], [1], [0, 0, 1, 1], [], []>} : vector<4x128xbf16>, vector<128x128xbf16>, vector<4x128xf32> -> vector<4x128xf32>
    %cst_5 = arith.constant dense<0.000000e+00> : vector<4x128xf32>
    %15 = tpu.matmul %13, %1, %cst_5 {dimension_numbers = #tpu.dot_dimension_numbers<[1], [0], [0], [1], [0, 0, 1, 1], [], []>} : vector<4x128xbf16>, vector<128x128xbf16>, vector<4x128xf32> -> vector<4x128xf32>
    %16 = arith.addf %14, %15 : vector<4x128xf32>
    %17 = arith.mulf %8, %8 : vector<4x128xf32>
    %18 = arith.subf %16, %17 : vector<4x128xf32>
    %cst_6 = arith.constant 0.000000e+00 : f32
    %19 = vector.broadcast %cst_6 : f32 to vector<4x128xf32>
    %20 = arith.maximumf %18, %19 : vector<4x128xf32>
    %21 = arith.subf %0, %8 : vector<4x128xf32>
    %cst_7 = arith.constant 9.99999974E-6 : f32
    %22 = vector.broadcast %cst_7 : f32 to vector<4x128xf32>
    %23 = arith.addf %20, %22 : vector<4x128xf32>
    %24 = math.rsqrt %23 : vector<4x128xf32>
    %25 = arith.mulf %21, %24 : vector<4x128xf32>
    %c0_8 = arith.constant 0 : index
    %c0_9 = arith.constant 0 : index
    %26 = vector.load %arg2[%c0_8, %c0_9] : memref<1x128xf32, #tpu.memory_space<vmem>>, vector<1x128xf32>
    %27 = vector.broadcast %26 : vector<1x128xf32> to vector<4x128xf32>
    %28 = arith.mulf %25, %27 : vector<4x128xf32>
    %c0_10 = arith.constant 0 : index
    %c0_11 = arith.constant 0 : index
    %29 = vector.load %arg3[%c0_10, %c0_11] : memref<1x128xf32, #tpu.memory_space<vmem>>, vector<1x128xf32>
    %30 = vector.broadcast %29 : vector<1x128xf32> to vector<4x128xf32>
    %31 = arith.addf %28, %30 : vector<4x128xf32>
    %c0_12 = arith.constant 0 : index
    %c0_13 = arith.constant 0 : index
    %32 = vector.load %arg5[%c0_12, %c0_13] : memref<4x128xf32, #tpu.memory_space<vmem>>, vector<4x128xf32>
    tpu.vector_store %arg5[%c0_12, %c0_13], %31 {strides = array<i32>} : memref<4x128xf32, #tpu.memory_space<vmem>>, vector<4x128xf32>,
    return
  }
  func.func @transform_0(%arg0: i32) -> (i32, i32) {
    %c0_i32 = arith.constant 0 : i32
    %c0_i32_0 = arith.constant 0 : i32
    return %arg0, %c0_i32 : i32, i32
  }
  func.func @transform_1(%arg0: i32) -> (i32, i32) {
    %c0_i32 = arith.constant 0 : i32
    %c0_i32_0 = arith.constant 0 : i32
    %c0_i32_1 = arith.constant 0 : i32
    return %c0_i32, %c0_i32_0 : i32, i32
  }
  func.func @transform_2(%arg0: i32) -> (i32, i32) {
    %c0_i32 = arith.constant 0 : i32
    %c0_i32_0 = arith.constant 0 : i32
    %c0_i32_1 = arith.constant 0 : i32
    return %c0_i32, %c0_i32_0 : i32, i32
  }
  func.func @transform_3(%arg0: i32) -> (i32, i32) {
    %c0_i32 = arith.constant 0 : i32
    %c0_i32_0 = arith.constant 0 : i32
    %c0_i32_1 = arith.constant 0 : i32
    return %c0_i32, %c0_i32_0 : i32, i32
  }
  func.func @transform_4(%arg0: i32) -> (i32, i32) {
    %c0_i32 = arith.constant 0 : i32
    %c0_i32_0 = arith.constant 0 : i32
    return %arg0, %c0_i32 : i32, i32
  }
}

</mosaic_0001>

<llo_original>
// kernel: tpu_custom_call.1
$region0: #{tpu_custom_call.1}
  #allocation0 [shape = 'u32[]', space=smem, size = 0x4, offset = 0x4, fixed_abs, tag = 'smem constant byte address 0x4 - core index']
  #allocation1 [shape = 'u32[72,128]{1,0:T(1,128)}', space=vmem, size = 0x9000, scoped, tag = 'internal scratch']
  %s0 = inlined_call_operand.hbm [shape: f32[4,128], index: 0, kind: input, shape index: {}]
  %s1 = inlined_call_operand.hbm [shape: f32[1,128], index: 1, kind: input, shape index: {}]
  %s2 = inlined_call_operand.vmem [shape: f32[1,128], index: 2, kind: input, shape index: {}]
  %s3 = inlined_call_operand.hbm [shape: bf16[128,128], index: 3, kind: input, shape index: {}]
  %s4 = inlined_call_operand.hbm [shape: f32[4,128], index: 4, kind: output, shape index: {}]
  %s5 = sld [smem:[#allocation0]]
  $region38: #{tpu_custom_call.1} parent=0
    _
  %s7 = ssub.s32 1, %s5
  %s8 = scalar_select 0, %s7, %s5
  $region1: #{tpu_custom_call.1} parent=0
    #allocation2 [shape = 'u8[2048]{0}', space=vmem, size = 0x800, scoped, tag = 'input window, operand 0, single buffered']
    #allocation3 [shape = 's32[1]{0}', space=sflag, size = 0x4, scoped, tag = 'scoped memory for tpu_custom_call.1']
    #allocation4 [shape = 's32[1]{0}', space=sflag, size = 0x4, scoped, tag = 'scoped memory for tpu_custom_call.1']
    #allocation5 [shape = 'u8[512]{0}', space=vmem, size = 0x400, scoped, tag = 'input window, operand 1, single buffered']
    #allocation6 [shape = 's32[1]{0}', space=sflag, size = 0x4, scoped, tag = 'scoped memory for tpu_custom_call.1']
    #allocation7 [shape = 'u8[32768]{0}', space=vmem, size = 0x8000, scoped, tag = 'input window, operand 3, single buffered']
    #allocation8 [shape = 'u8[2048]{0}', space=vmem, size = 0x800, scoped, tag = 'output window, operand 0, single buffered']
    %9 = vsyncpa [#allocation3], 0
    %10 = vsyncpa [#allocation6], 0
    %11 = vsyncpa [#allocation4], 0
    // Predicated region
    $region2: #{tpu_custom_call.1} parent=1 // pred_check
      _
    $region3: #{tpu_custom_call.1} parent=1 // pred_check_branch
      %13 = sbr.rel (0) target = $region5
    $region4: #{tpu_custom_call.1} parent=1 // pred_region
      %15 = vsyncadd [#allocation3], 0
      %s17 = sshll.u32 %s0, 4
      %s18 = int_to_ptr.hbm [resolvable:$true] %s17
      %s19 = sshll.u32 [#allocation2], 4
      %s20 = int_to_ptr.vmem [resolvable:$true] %s19
      %22 = dma.hbm_to_vmem [thread:$0]  %s18, 64, %s20, [#allocation3]
    $region5: #{tpu_custom_call.1} parent=1 // pred_fallthru
      _
    // Predicated region
    $region6: #{tpu_custom_call.1} parent=1 // pred_check
      _
    $region7: #{tpu_custom_call.1} parent=1 // pred_check_branch
      %24 = sbr.rel (0) target = $region9
    $region8: #{tpu_custom_call.1} parent=1 // pred_region
      %26 = vsyncadd [#allocation6], 0
      %s28 = sshll.u32 %s1, 4
      %s29 = int_to_ptr.hbm [resolvable:$true] %s28
      %s30 = sshll.u32 [#allocation5], 4
      %s31 = int_to_ptr.vmem [resolvable:$true] %s30
      %33 = dma.hbm_to_vmem [thread:$0]  %s29, 16, %s31, [#allocation6]
    $region9: #{tpu_custom_call.1} parent=1 // pred_fallthru
      _
    // Predicated region
    $region10: #{tpu_custom_call.1} parent=1 // pred_check
      _
    $region11: #{tpu_custom_call.1} parent=1 // pred_check_branch
      %35 = sbr.rel (0) target = $region13
    $region12: #{tpu_custom_call.1} parent=1 // pred_region
      _
    $region13: #{tpu_custom_call.1} parent=1 // pred_fallthru
      _
    // Predicated region
    $region14: #{tpu_custom_call.1} parent=1 // pred_check
      _
    $region15: #{tpu_custom_call.1} parent=1 // pred_check_branch
      %37 = sbr.rel (0) target = $region17
    $region16: #{tpu_custom_call.1} parent=1 // pred_region
      %39 = vsyncadd [#allocation6], 0
      %s40 = sshll.u32 %s3, 4
      %s41 = int_to_ptr.hbm [resolvable:$true] %s40
      %s42 = sshll.u32 [#allocation7], 4
      %s43 = int_to_ptr.vmem [resolvable:$true] %s42
      %48 = dma.hbm_to_vmem [thread:$0]  %s41, 1024, %s43, [#allocation6], 64, 64, 4
    $region17: #{tpu_custom_call.1} parent=1 // pred_fallthru
      _
    // Predicated region
    $region18: #{tpu_custom_call.1} parent=1 // pred_check
      _
    $region19: #{tpu_custom_call.1} parent=1 // pred_check_branch
      %50 = sbr.rel (0) target = $region21
    $region20: #{tpu_custom_call.1} parent=1 // pred_region
      %52 = dma.done [#allocation3], 64
    $region21: #{tpu_custom_call.1} parent=1 // pred_fallthru
      _
    // Predicated region
    $region22: #{tpu_custom_call.1} parent=1 // pred_check
      _
    $region23: #{tpu_custom_call.1} parent=1 // pred_check_branch
      %54 = sbr.rel (0) target = $region25
    $region24: #{tpu_custom_call.1} parent=1 // pred_region
      %56 = dma.done [#allocation6], 16
    $region25: #{tpu_custom_call.1} parent=1 // pred_fallthru
      _
    // Predicated region
    $region26: #{tpu_custom_call.1} parent=1 // pred_check
      _
    $region27: #{tpu_custom_call.1} parent=1 // pred_check_branch
      %58 = sbr.rel (0) target = $region29
    $region28: #{tpu_custom_call.1} parent=1 // pred_region
      %60 = dma.done [#allocation6], 1024
    $region29: #{tpu_custom_call.1} parent=1 // pred_fallthru
      _
    %v61 = vld [vmem:[#allocation2] sm:$0xf]
    %v62 = vld [vmem:[#allocation7] sm:$0xf]
    %v63 = vld [vmem:[#allocation7 + $0x4] sm:$0xf]
    %v64 = vld [vmem:[#allocation7 + $0x8] sm:$0xf]
    %v65 = vld [vmem:[#allocation7 + $0xc] sm:$0xf]
    %v66 = vld [vmem:[#allocation7 + $0x10] sm:$0xf]
    %v67 = vld [vmem:[#allocation7 + $0x14] sm:$0xf]
    %v68 = vld [vmem:[#allocation7 + $0x18] sm:$0xf]
    %v69 = vld [vmem:[#allocation7 + $0x1c] sm:$0xf]
    %v70 = vld [vmem:[#allocation7 + $0x20] sm:$0xf]
    %v71 = vld [vmem:[#allocation7 + $0x24] sm:$0xf]
    %v72 = vld [vmem:[#allocation7 + $0x28] sm:$0xf]
    %v73 = vld [vmem:[#allocation7 + $0x2c] sm:$0xf]
    %v74 = vld [vmem:[#allocation7 + $0x30] sm:$0xf]
    %v75 = vld [vmem:[#allocation7 + $0x34] sm:$0xf]
    %v76 = vld [vmem:[#allocation7 + $0x38] sm:$0xf]
    %v77 = vld [vmem:[#allocation7 + $0x3c] sm:$0xf]
    %v78 = vpack.c.bf16 %v61, %v61
    %v79 = vunpack.c.l.bf16 %v78
    %v80 = vsub.f32 %v61, %v79
    %v81 = vpack.c.bf16 %v80, %v80
    %v98 = vunpack.c.l.b16 %v62
    %v99 = vunpack.c.l.b16 %v63
    %v100 = vunpack.c.l.b16 %v64
    %v101 = vunpack.c.l.b16 %v65
    %v102 = vunpack.c.l.b16 %v66
    %v103 = vunpack.c.l.b16 %v67
    %v104 = vunpack.c.l.b16 %v68
    %v105 = vunpack.c.l.b16 %v69
    %v106 = vunpack.c.l.b16 %v70
    %v107 = vunpack.c.l.b16 %v71
    %v108 = vunpack.c.l.b16 %v72
    %v109 = vunpack.c.l.b16 %v73
    %v110 = vunpack.c.l.b16 %v74
    %v111 = vunpack.c.l.b16 %v75
    %v112 = vunpack.c.l.b16 %v76
    %v113 = vunpack.c.l.b16 %v77
    %v114 = vpack.c.b16 %v99, %v98
    %v115 = vpack.c.b16 %v101, %v100
    %v116 = vpack.c.b16 %v103, %v102
    %v117 = vpack.c.b16 %v105, %v104
    %v118 = vpack.c.b16 %v107, %v106
    %v119 = vpack.c.b16 %v109, %v108
    %v120 = vpack.c.b16 %v111, %v110
    %v121 = vpack.c.b16 %v113, %v112
    %130 = vmatpush.bf16.msra.mxu0 %v121
    %131 = vmatpush.bf16.msra.mxu0 %v120
    %132 = vmatpush.bf16.msra.mxu0 %v119
    %133 = vmatpush.bf16.msra.mxu0 %v118
    %134 = vmatpush.bf16.msra.mxu0 %v117
    %135 = vmatpush.bf16.msra.mxu0 %v116
    %136 = vmatpush.bf16.msra.mxu0 %v115
    %137 = vmatpush.bf16.msra.mxu0 %v114
    %138 = vmatmul.bf16.gmra.mxu0 %v81
    %v139 = vpop.f32.mrf.mxu0
    %v140 = vadd.f32 0.0, %v139
    %v141 = vpop.f32.mrf.mxu0
    %142 = vdwg.mxu0
    %143 = vmatpush.bf16.msra.mxu0 %v121
    %144 = vmatpush.bf16.msra.mxu0 %v120
    %145 = vmatpush.bf16.msra.mxu0 %v119
    %146 = vmatpush.bf16.msra.mxu0 %v118
    %147 = vmatpush.bf16.msra.mxu0 %v117
    %148 = vmatpush.bf16.msra.mxu0 %v116
    %149 = vmatpush.bf16.msra.mxu0 %v115
    %150 = vmatpush.bf16.msra.mxu0 %v114
    %151 = vmatmul.bf16.gmra.mxu0 %v78
    %v152 = vpop.f32.mrf.mxu0
    %v153 = vadd.f32 %v140, %v152
    %v154 = vpop.f32.mrf.mxu0
    %155 = vdwg.mxu0
    %v156 = vmul.f32 %v61, %v61
    %v157 = vpack.c.bf16 %v156, %v156
    %v158 = vunpack.c.l.bf16 %v157
    %v159 = vsub.f32 %v156, %v158
    %v160 = vpack.c.bf16 %v159, %v159
    %161 = vmatpush.bf16.msra.mxu0 %v121
    %162 = vmatpush.bf16.msra.mxu0 %v120
    %163 = vmatpush.bf16.msra.mxu0 %v119
    %164 = vmatpush.bf16.msra.mxu0 %v118
    %165 = vmatpush.bf16.msra.mxu0 %v117
    %166 = vmatpush.bf16.msra.mxu0 %v116
    %167 = vmatpush.bf16.msra.mxu0 %v115
    %168 = vmatpush.bf16.msra.mxu0 %v114
    %169 = vmatmul.bf16.gmra.mxu0 %v160
    %v170 = vpop.f32.mrf.mxu0
    %v171 = vadd.f32 0.0, %v170
    %v172 = vpop.f32.mrf.mxu0
    %173 = vdwg.mxu0
    %174 = vmatpush.bf16.msra.mxu0 %v121
    %175 = vmatpush.bf16.msra.mxu0 %v120
    %176 = vmatpush.bf16.msra.mxu0 %v119
    %177 = vmatpush.bf16.msra.mxu0 %v118
    %178 = vmatpush.bf16.msra.mxu0 %v117
    %179 = vmatpush.bf16.msra.mxu0 %v116
    %180 = vmatpush.bf16.msra.mxu0 %v115
    %181 = vmatpush.bf16.msra.mxu0 %v114
    %182 = vmatmul.bf16.gmra.mxu0 %v157
    %v183 = vpop.f32.mrf.mxu0
    %v184 = vadd.f32 %v171, %v183
    %v185 = vpop.f32.mrf.mxu0
    %186 = vdwg.mxu0
    %v187 = vmul.f32 %v153, %v153
    %v188 = vsub.f32 %v184, %v187
    %v189 = vmax.f32 %v188, 0.0
    %v190 = vsub.f32 %v61, %v153
    %v191 = vadd.f32 %v189, 1e-05
    %v192 = vrsqrt.pop %v191
    %v193 = vmul.f32 %v192, %v191
    %v194 = vmul.f32 %v193, %v192
    %v195 = vmul.f32 0.5, %v194
    %v196 = vsub.f32 1.5, %v195
    %v197 = vmul.f32 %v192, %v196
    %vm198 = vweird.f32 %v191
    %vm199 = vweird.f32 %v192
    %vm200 = vmor %vm198, %vm199
    %v201 = vsel %vm200, %v192, %v197
    %v202 = vmul.f32 %v190, %v201
    %v203 = vld [vmem:[#allocation5] sm:$0x1]
    %v205 = vperm.slane %v203, 0
    %v207 = vmul.f32 %v202, %v205
    %v208 = vld [vmem:[%s2] sm:$0x1]
    %v210 = vperm.slane %v208, 0
    %v212 = vadd.f32 %v207, %v210
    %213 = vst [vmem:[#allocation8] sm:$0xf] %v212
    // Predicated region
    $region30: #{tpu_custom_call.1} parent=1 // pred_check
      _
    $region31: #{tpu_custom_call.1} parent=1 // pred_check_branch
      %215 = sbr.rel (0) target = $region33
    $region32: #{tpu_custom_call.1} parent=1 // pred_region
      %217 = vsyncadd [#allocation4], 0
      %s219 = sshll.u32 [#allocation8], 4
      %s220 = int_to_ptr.vmem [resolvable:$true] %s219
      %s221 = sshll.u32 %s4, 4
      %s222 = int_to_ptr.hbm [resolvable:$true] %s221
      %224 = dma.vmem_to_hbm [thread:$0]  %s220, 64, %s222, [#allocation4]
    $region33: #{tpu_custom_call.1} parent=1 // pred_fallthru
      _
    // Predicated region
    $region34: #{tpu_custom_call.1} parent=1 // pred_check
      _
    $region35: #{tpu_custom_call.1} parent=1 // pred_check_branch
      %226 = sbr.rel (0) target = $region37
    $region36: #{tpu_custom_call.1} parent=1 // pred_region
      %228 = dma.done [#allocation4], 64
    $region37: #{tpu_custom_call.1} parent=1 // pred_fallthru
      _
    %229 = vsyncpa [#allocation3], 1
    %230 = vsyncpa [#allocation6], 1
    %231 = vsyncpa [#allocation4], 1

</llo_original>
